<compile_context>
chip_gen: v7x
topology: tpu7x:2x2x1
jax: 0.10.0
libtpu: 0.0.40
codegen_flags: <defaults>
</compile_context>

<pallas_src>
import functools

import jax
import jax.numpy as jnp
from jax import lax
from jax.experimental import pallas as pl
from jax.experimental.pallas import tpu as pltpu

BPR_ALPHA = 0.7


def _bpr_kernel(st_ref, idx_ref, rat_ref, out_ref, *, n_total):
    """One batch block.

    st_ref:  [n_item, n_user] f32   resident all-pairs score table S^T
    idx_ref: [3, block_n]     int32 rows = (u | i | j), batch on the lane axis
    rat_ref: [2, block_n]     f32   rows = (ui | uj)
    out_ref: [1, block_n]     f32   per-example weighted loss contributions
    """
    n_item, n_user = st_ref.shape
    tn = idx_ref.shape[1]

    u_idx = idx_ref[0:1, :]                                     # [1, tn]
    i_idx = idx_ref[1:2, :]
    j_idx = idx_ref[2:3, :]

    # One-hot MXU gather of the user-selected score rows: su[item, n] = S[u[n], item].
    oh_u = (lax.broadcasted_iota(jnp.int32, (n_user, tn), 0) == u_idx
            ).astype(jnp.float32)                               # [U, tn]
    su = jnp.dot(st_ref[...], oh_u,
                 preferred_element_type=jnp.float32)            # [I, tn]   (MXU)

    # Select the i / j entries with one-hot masks + a sublane reduce (stays lane-dense).
    iota_item = lax.broadcasted_iota(jnp.int32, (n_item, tn), 0)
    oh_i = (iota_item == i_idx).astype(jnp.float32)             # [I, tn]
    oh_j = (iota_item == j_idx).astype(jnp.float32)
    rui = jnp.sum(su * oh_i, axis=0, keepdims=True)             # [1, tn]
    ruj = jnp.sum(su * oh_j, axis=0, keepdims=True)             # [1, tn]

    # BPR term: numerically stable log-sigmoid of (rui - ruj).
    r_uij = rui - ruj
    logsig = jnp.minimum(r_uij, 0.0) - jnp.log1p(jnp.exp(-jnp.abs(r_uij)))

    # Score term: smooth-L1 (Huber, beta = 1.0) against the observed ratings.
    rat = rat_ref[...]                                          # [2, tn]

    def huber(d):
        ad = jnp.abs(d)
        return jnp.where(ad < 1.0, 0.5 * d * d, ad - 0.5)

    hi = huber(rui - rat[0:1, :])
    hj = huber(ruj - rat[1:2, :])

    # Fold means and alpha into per-example weights:
    #   loss = sum_n [ -0.7/N * logsig_n + 0.3*0.5/N * (hi_n + hj_n) ]
    w_bpr = -BPR_ALPHA / n_total
    w_sc = (1.0 - BPR_ALPHA) * 0.5 / n_total
    out_ref[...] = w_bpr * logsig + w_sc * (hi + hj)


def bpr_forward(params, u, i, j, ui, uj, *, block_n=None):
    """BPRNetwork forward (add_bias=True, add_score_loss=True) -> scalar loss."""
    m, bu, bi, p, q = params
    n_user = p.shape[0]
    n_item = q.shape[0]
    n = u.shape[0]
    f32 = jnp.float32

    if block_n is None:
        block_n = n if n <= 1024 else 1024
    assert n % block_n == 0, "batch size must be a multiple of block_n"
    assert block_n == n or block_n % 128 == 0, \
        "block_n must equal the batch or be a multiple of the 128-lane width"

    # All-pairs bias-folded score table, transposed so the in-kernel gather matmul is
    # S^T[item, user] @ one_hot_u[user, batch].  Tiny at these recommender table sizes.
    # TODO(synk): for large user/item tables (more than a few hundred rows) cut over to
    #   per-row one-hot gathers of p/q (or HBM-resident tables + DMA gather) instead of
    #   materializing the [n_item, n_user] all-pairs matrix, and single-buffer the
    #   resident table (pipeline_mode=pl.Buffered(1)) to respect v7x's 64 MiB VMEM.
    st = (m.astype(f32).reshape(1, 1)
          + bi.astype(f32)[:, None]
          + bu.astype(f32)[None, :]
          + q.astype(f32) @ p.astype(f32).T)                    # [n_item, n_user]

    idx = jnp.stack([u, i, j], axis=0).astype(jnp.int32)        # [3, N]  lane-dense
    rat = jnp.stack([ui, uj], axis=0).astype(f32)               # [2, N]  lane-dense

    kernel = functools.partial(_bpr_kernel, n_total=n)

    grid_spec = pltpu.PrefetchScalarGridSpec(
        num_scalar_prefetch=0,
        grid=(n // block_n,),
        in_specs=[
            pl.BlockSpec((n_item, n_user), lambda b: (0, 0)),   # whole table, resident
            pl.BlockSpec((3, block_n), lambda b: (0, b)),       # per-block indices
            pl.BlockSpec((2, block_n), lambda b: (0, b)),       # per-block ratings
        ],
        out_specs=pl.BlockSpec((1, block_n), lambda b: (0, b)), # disjoint per-block slice
    )

    contrib = pl.pallas_call(
        kernel,
        out_shape=jax.ShapeDtypeStruct((1, n), f32),
        grid_spec=grid_spec,
        compiler_params=pltpu.CompilerParams(
            # Disjoint per-block outputs, no shared accumulator -> batch axis can be
            # sharded across TensorCores (v7x megacore) safely.
            dimension_semantics=("parallel",),
        ),
    )(st, idx, rat)

    return jnp.sum(contrib)


def reference_forward(params, u, i, j, ui, uj):
    """Pure-JAX reference mirroring the PyTorch module."""
    m, bu, bi, p, q = params

    def score(uu, ii):
        return m[0] + bu[uu] + bi[ii] + jnp.sum(p[uu] * q[ii], axis=1)

    rui = score(u, i)
    ruj = score(u, j)
    los_bpr = -jnp.mean(jax.nn.log_sigmoid(rui - ruj))

    def smooth_l1(pred, target):
        d = pred - target
        ad = jnp.abs(d)
        return jnp.mean(jnp.where(ad < 1.0, 0.5 * d * d, ad - 0.5))

    los_score = 0.5 * (smooth_l1(rui, ui) + smooth_l1(ruj, uj))
    return BPR_ALPHA * los_bpr + (1.0 - BPR_ALPHA) * los_score


if __name__ == "__main__":
    user_number = 32
    spu_number = 48
    embedd_dim = 32
    batch = 16  # N triples (u, i, j, ui, uj)

    key = jax.random.PRNGKey(0)
    k_bu, k_bi, k_p, k_q, k_u, k_i, k_j, k_ui, k_uj = jax.random.split(key, 9)

    m = jnp.zeros((1,), jnp.float32)
    bu = jax.random.normal(k_bu, (user_number,), jnp.float32)
    bi = jax.random.normal(k_bi, (spu_number,), jnp.float32)
    p = jax.random.normal(k_p, (user_number, embedd_dim), jnp.float32)
    q = jax.random.normal(k_q, (spu_number, embedd_dim), jnp.float32)
    params = (m, bu, bi, p, q)

    u = jax.random.randint(k_u, (batch,), 0, user_number)
    i = jax.random.randint(k_i, (batch,), 0, spu_number)
    j = jax.random.randint(k_j, (batch,), 0, spu_number)
    ui = jax.random.uniform(k_ui, (batch,), jnp.float32, 1.0, 5.0)
    uj = jax.random.uniform(k_uj, (batch,), jnp.float32, 1.0, 5.0)

    loss = jax.block_until_ready(bpr_forward(params, u, i, j, ui, uj))
    ref = jax.block_until_ready(reference_forward(params, u, i, j, ui, uj))
    # Slightly looser than 1e-5: the all-pairs table uses a matmul whose summation
    # order differs from the reference's per-example elementwise dot.
    assert jnp.allclose(loss, ref, rtol=1e-4, atol=1e-4), (loss, ref)

    print("KERNEL_OK")
</pallas_src>

<mosaic_0001>
module attributes {stable_mosaic.version = 11 : i64} {
  func.func @_bpr_kernel(%arg0: i32, %arg1: memref<48x32xf32, #tpu.memory_space<vmem>>, %arg2: memref<3x16xi32, #tpu.memory_space<vmem>>, %arg3: memref<2x16xf32, #tpu.memory_space<vmem>>, %arg4: memref<1x16xf32, #tpu.memory_space<vmem>>) attributes {dimension_semantics = [#tpu.dimension_semantics<parallel>], iteration_bounds = array<i64: 1>, scalar_prefetch = 0 : i64, scratch_operands = 0 : i64, tpu.core_type = #tpu.core_type<tc>, window_params = [{pipeline_mode = #tpu.pipeline_mode<synchronous>, transform_indices = @transform_0, window_bounds = array<i64: 48, 32>}, {transform_indices = @transform_1, window_bounds = array<i64: 3, 16>}, {transform_indices = @transform_2, window_bounds = array<i64: 2, 16>}, {transform_indices = @transform_3, window_bounds = array<i64: 1, 16>}]} {
    %c0 = arith.constant 0 : index
    %c0_0 = arith.constant 0 : index
    %0 = vector.load %arg2[%c0, %c0_0] : memref<3x16xi32, #tpu.memory_space<vmem>>, vector<1x16xi32>
    %c1 = arith.constant 1 : index
    %c0_1 = arith.constant 0 : index
    %1 = vector.load %arg2[%c1, %c0_1] : memref<3x16xi32, #tpu.memory_space<vmem>>, vector<1x16xi32>
    %c2 = arith.constant 2 : index
    %c0_2 = arith.constant 0 : index
    %2 = vector.load %arg2[%c2, %c0_2] : memref<3x16xi32, #tpu.memory_space<vmem>>, vector<1x16xi32>
    %3 = tpu.iota {dimensions = array<i32: 0>} : vector<32x16xi32>
    %4 = vector.broadcast %0 : vector<1x16xi32> to vector<32x16xi32>
    %5 = arith.cmpi eq, %3, %4 : vector<32x16xi32>
    %6 = arith.extui %5 : vector<32x16xi1> to vector<32x16xi32>
    %7 = arith.sitofp %6 : vector<32x16xi32> to vector<32x16xf32>
    %c0_3 = arith.constant 0 : index
    %c0_4 = arith.constant 0 : index
    %8 = vector.load %arg1[%c0_3, %c0_4] : memref<48x32xf32, #tpu.memory_space<vmem>>, vector<48x32xf32>
    %cst = arith.constant dense<0.000000e+00> : vector<48x16xf32>
    %9 = tpu.matmul %8, %7, %cst {dimension_numbers = #tpu.dot_dimension_numbers<[1], [0], [0], [1], [0, 0, 1, 1], [], []>} : vector<48x32xf32>, vector<32x16xf32>, vector<48x16xf32> -> vector<48x16xf32>
    %10 = tpu.iota {dimensions = array<i32: 0>} : vector<48x16xi32>
    %11 = vector.broadcast %1 : vector<1x16xi32> to vector<48x16xi32>
    %12 = arith.cmpi eq, %10, %11 : vector<48x16xi32>
    %13 = arith.extui %12 : vector<48x16xi1> to vector<48x16xi32>
    %14 = arith.sitofp %13 : vector<48x16xi32> to vector<48x16xf32>
    %15 = vector.broadcast %2 : vector<1x16xi32> to vector<48x16xi32>
    %16 = arith.cmpi eq, %10, %15 : vector<48x16xi32>
    %17 = arith.extui %16 : vector<48x16xi1> to vector<48x16xi32>
    %18 = arith.sitofp %17 : vector<48x16xi32> to vector<48x16xf32>
    %19 = arith.mulf %9, %14 : vector<48x16xf32>
    %cst_5 = arith.constant dense<0.000000e+00> : vector<16xf32>
    %20 = vector.multi_reduction <add>, %19, %cst_5 [0] : vector<48x16xf32> to vector<16xf32>
    %21 = vector.shape_cast %20 : vector<16xf32> to vector<1x16xf32>
    %22 = arith.mulf %9, %18 : vector<48x16xf32>
    %cst_6 = arith.constant dense<0.000000e+00> : vector<16xf32>
    %23 = vector.multi_reduction <add>, %22, %cst_6 [0] : vector<48x16xf32> to vector<16xf32>
    %24 = vector.shape_cast %23 : vector<16xf32> to vector<1x16xf32>
    %25 = arith.subf %21, %24 : vector<1x16xf32>
    %cst_7 = arith.constant 0.000000e+00 : f32
    %26 = vector.broadcast %cst_7 : f32 to vector<1x16xf32>
    %27 = arith.minimumf %25, %26 : vector<1x16xf32>
    %28 = math.absf %25 : vector<1x16xf32>
    %cst_8 = arith.constant 0.000000e+00 : f32
    %29 = vector.broadcast %cst_8 : f32 to vector<1x16xf32>
    %30 = arith.subf %29, %28 : vector<1x16xf32>
    %31 = math.exp %30 : vector<1x16xf32>
    %32 = math.log1p %31 : vector<1x16xf32>
    %33 = arith.subf %27, %32 : vector<1x16xf32>
    %c0_9 = arith.constant 0 : index
    %c0_10 = arith.constant 0 : index
    %34 = vector.load %arg3[%c0_9, %c0_10] : memref<2x16xf32, #tpu.memory_space<vmem>>, vector<2x16xf32>
    %35 = vector.extract_strided_slice %34 {offsets = [0, 0], sizes = [1, 16], strides = [1, 1]} : vector<2x16xf32> to vector<1x16xf32>
    %36 = arith.subf %21, %35 : vector<1x16xf32>
    %37 = math.absf %36 : vector<1x16xf32>
    %cst_11 = arith.constant 1.000000e+00 : f32
    %38 = vector.broadcast %cst_11 : f32 to vector<1x16xf32>
    %39 = arith.cmpf olt, %37, %38 : vector<1x16xf32>
    %cst_12 = arith.constant 5.000000e-01 : f32
    %40 = vector.broadcast %cst_12 : f32 to vector<1x16xf32>
    %41 = arith.mulf %40, %36 : vector<1x16xf32>
    %42 = arith.mulf %41, %36 : vector<1x16xf32>
    %cst_13 = arith.constant 5.000000e-01 : f32
    %43 = vector.broadcast %cst_13 : f32 to vector<1x16xf32>
    %44 = arith.subf %37, %43 : vector<1x16xf32>
    %45 = arith.select %39, %42, %44 : vector<1x16xi1>, vector<1x16xf32>
    %46 = vector.extract_strided_slice %34 {offsets = [1, 0], sizes = [1, 16], strides = [1, 1]} : vector<2x16xf32> to vector<1x16xf32>
    %47 = arith.subf %24, %46 : vector<1x16xf32>
    %48 = math.absf %47 : vector<1x16xf32>
    %cst_14 = arith.constant 1.000000e+00 : f32
    %49 = vector.broadcast %cst_14 : f32 to vector<1x16xf32>
    %50 = arith.cmpf olt, %48, %49 : vector<1x16xf32>
    %cst_15 = arith.constant 5.000000e-01 : f32
    %51 = vector.broadcast %cst_15 : f32 to vector<1x16xf32>
    %52 = arith.mulf %51, %47 : vector<1x16xf32>
    %53 = arith.mulf %52, %47 : vector<1x16xf32>
    %cst_16 = arith.constant 5.000000e-01 : f32
    %54 = vector.broadcast %cst_16 : f32 to vector<1x16xf32>
    %55 = arith.subf %48, %54 : vector<1x16xf32>
    %56 = arith.select %50, %53, %55 : vector<1x16xi1>, vector<1x16xf32>
    %cst_17 = arith.constant -4.375000e-02 : f32
    %57 = vector.broadcast %cst_17 : f32 to vector<1x16xf32>
    %58 = arith.mulf %57, %33 : vector<1x16xf32>
    %59 = arith.addf %45, %56 : vector<1x16xf32>
    %cst_18 = arith.constant 9.375000e-03 : f32
    %60 = vector.broadcast %cst_18 : f32 to vector<1x16xf32>
    %61 = arith.mulf %60, %59 : vector<1x16xf32>
    %62 = arith.addf %58, %61 : vector<1x16xf32>
    %c0_19 = arith.constant 0 : index
    %c0_20 = arith.constant 0 : index
    %63 = vector.load %arg4[%c0_19, %c0_20] : memref<1x16xf32, #tpu.memory_space<vmem>>, vector<1x16xf32>
    tpu.vector_store %arg4[%c0_19, %c0_20], %62 {strides = array<i32>} : memref<1x16xf32, #tpu.memory_space<vmem>>, vector<1x16xf32>,
    return
  }
  func.func @transform_0(%arg0: i32) -> (i32, i32) {
    %c0_i32 = arith.constant 0 : i32
    %c0_i32_0 = arith.constant 0 : i32
    %c0_i32_1 = arith.constant 0 : i32
    return %c0_i32, %c0_i32_0 : i32, i32
  }
  func.func @transform_1(%arg0: i32) -> (i32, i32) {
    %c0_i32 = arith.constant 0 : i32
    %c0_i32_0 = arith.constant 0 : i32
    return %c0_i32, %arg0 : i32, i32
  }
  func.func @transform_2(%arg0: i32) -> (i32, i32) {
    %c0_i32 = arith.constant 0 : i32
    %c0_i32_0 = arith.constant 0 : i32
    return %c0_i32, %arg0 : i32, i32
  }
  func.func @transform_3(%arg0: i32) -> (i32, i32) {
    %c0_i32 = arith.constant 0 : i32
    %c0_i32_0 = arith.constant 0 : i32
    return %c0_i32, %arg0 : i32, i32
  }
}

</mosaic_0001>

<llo_original>
// kernel: tpu_custom_call.1
$region0: #{tpu_custom_call.1}
  #allocation0 [shape = 'u32[]', space=smem, size = 0x4, offset = 0x4, fixed_abs, tag = 'smem constant byte address 0x4 - core index']
  #allocation1 [shape = 'u32[144,128]{1,0:T(1,128)}', space=vmem, size = 0x12000, scoped, tag = 'internal scratch']
  %s0 = inlined_call_operand.vmem [shape: f32[48,32], index: 0, kind: input, shape index: {}]
  %s1 = inlined_call_operand.vmem [shape: s32[3,16], index: 1, kind: input, shape index: {}]
  %s2 = inlined_call_operand.vmem [shape: f32[2,16], index: 2, kind: input, shape index: {}]
  %s3 = inlined_call_operand.hbm [shape: f32[1,16], index: 3, kind: output, shape index: {}]
  %s4 = sld [smem:[#allocation0]]
  $region22: #{tpu_custom_call.1} parent=0
    _
  %s6 = ssub.s32 1, %s4
  %s7 = scalar_select 0, %s6, %s4
  $region1: #{tpu_custom_call.1} parent=0
    #allocation2 [shape = 'u8[512]{0}', space=vmem, size = 0x400, scoped, tag = 'output window, operand 0, single buffered']
    #allocation3 [shape = 's32[1]{0}', space=sflag, size = 0x4, scoped, tag = 'scoped memory for tpu_custom_call.1']
    %8 = vsyncpa [#allocation3], 0
    // Predicated region
    $region2: #{tpu_custom_call.1} parent=1 // pred_check
      _
    $region3: #{tpu_custom_call.1} parent=1 // pred_check_branch
      %10 = sbr.rel (0) target = $region5
    $region4: #{tpu_custom_call.1} parent=1 // pred_region
      _
    $region5: #{tpu_custom_call.1} parent=1 // pred_fallthru
      _
    // Predicated region
    $region6: #{tpu_custom_call.1} parent=1 // pred_check
      _
    $region7: #{tpu_custom_call.1} parent=1 // pred_check_branch
      %12 = sbr.rel (0) target = $region9
    $region8: #{tpu_custom_call.1} parent=1 // pred_region
      _
    $region9: #{tpu_custom_call.1} parent=1 // pred_fallthru
      _
    // Predicated region
    $region10: #{tpu_custom_call.1} parent=1 // pred_check
      _
    $region11: #{tpu_custom_call.1} parent=1 // pred_check_branch
      %14 = sbr.rel (0) target = $region13
    $region12: #{tpu_custom_call.1} parent=1 // pred_region
      _
    $region13: #{tpu_custom_call.1} parent=1 // pred_fallthru
      _
    %v15 = vld [vmem:[%s1] sm:$0x1]
    %v16 = vld [vmem:[%s1 + $0x1] sm:$0x1]
    %v17 = vld [vmem:[%s1 + $0x2] sm:$0x1]
    %v18 = vlaneseq
    %v19 = vshrl.u32 %v18, 7
    %v20 = vadd.s32 %v19, 8
    %v21 = vadd.s32 %v19, 16
    %v22 = vadd.s32 %v19, 24
    %v23 = vlaneseq
    %v24 = vshrl.u32 %v23, 7
    %v25 = vsub.s32 0, %v24
    %v26 = vrot.slane %v15, %v25
    %vm27 = vcmp.eq.s32.totalorder %v19, %v26
    %vm28 = vcmp.eq.s32.totalorder %v20, %v26
    %vm29 = vcmp.eq.s32.totalorder %v21, %v26
    %vm30 = vcmp.eq.s32.totalorder %v22, %v26
    %v31 = vsel %vm27, 1, 0
    %v32 = vsel %vm28, 1, 0
    %v33 = vsel %vm29, 1, 0
    %v34 = vsel %vm30, 1, 0
    %v35 = vcvt.s32.f32 %v31
    %v36 = vcvt.s32.f32 %v32
    %v37 = vcvt.s32.f32 %v33
    %v38 = vcvt.s32.f32 %v34
    %v39 = vld [vmem:[%s0] sm:$0xff]
    %v40 = vld [vmem:[%s0 + $0x8] sm:$0xff]
    %v41 = vld [vmem:[%s0 + $0x10] sm:$0xff]
    %v42 = vld [vmem:[%s0 + $0x18] sm:$0xff]
    %v43 = vld [vmem:[%s0 + $0x20] sm:$0xff]
    %v44 = vld [vmem:[%s0 + $0x28] sm:$0xff]
    %vm45 = vcmask 261120
    %v47 = vsel %vm45, %v39, 0
    %v50 = vsel %vm45, %v40, 0
    %v53 = vsel %vm45, %v41, 0
    %v56 = vsel %vm45, %v42, 0
    %v59 = vsel %vm45, %v43, 0
    %v62 = vsel %vm45, %v44, 0
    %64 = vmatprep.subr.mxu0 0.0
    %65 = vmatpush1.msra.mxu0 %v35
    %66 = vmatprep.subr.mxu0 0.0
    %67 = vmatpush1.msra.mxu0 %v36
    %68 = vmatprep.subr.mxu0 0.0
    %69 = vmatpush1.msra.mxu0 %v37
    %70 = vmatprep.subr.mxu0 0.0
    %71 = vmatpush1.msra.mxu0 %v38
    %72 = vmatprep.subr.mxu0 0.0
    %73 = vmatpush1.msra.mxu0 0.0
    %74 = vmatprep.subr.mxu0 0.0
    %75 = vmatpush1.msra.mxu0 0.0
    %76 = vmatprep.subr.mxu0 0.0
    %77 = vmatpush1.msra.mxu0 0.0
    %78 = vmatprep.subr.mxu0 0.0
    %79 = vmatpush1.msra.mxu0 0.0
    %80 = vmatprep.subr.mxu0 0.0
    %81 = vmatpush1.msra.mxu0 0.0
    %82 = vmatprep.subr.mxu0 0.0
    %83 = vmatpush1.msra.mxu0 0.0
    %84 = vmatprep.subr.mxu0 0.0
    %85 = vmatpush1.msra.mxu0 0.0
    %86 = vmatprep.subr.mxu0 0.0
    %87 = vmatpush1.msra.mxu0 0.0
    %88 = vmatprep.subr.mxu0 0.0
    %89 = vmatpush1.msra.mxu0 0.0
    %90 = vmatprep.subr.mxu0 0.0
    %91 = vmatpush1.msra.mxu0 0.0
    %92 = vmatprep.subr.mxu0 0.0
    %93 = vmatpush1.msra.mxu0 0.0
    %94 = vmatprep.subr.mxu0 0.0
    %95 = vmatpush1.msra.mxu0 0.0
    %96 = vmatprep.subr.mxu0 0.0
    %97 = vmatpush1.msra.mxu0 0.0
    %98 = vmatprep.subr.mxu0 0.0
    %99 = vmatpush1.msra.mxu0 0.0
    %100 = vmatprep.subr.mxu0 0.0
    %101 = vmatpush1.msra.mxu0 0.0
    %102 = vmatprep.subr.mxu0 0.0
    %103 = vmatpush1.msra.mxu0 0.0
    %104 = vmatprep.subr.mxu0 0.0
    %105 = vmatpush1.msra.mxu0 0.0
    %106 = vmatprep.subr.mxu0 0.0
    %107 = vmatpush1.msra.mxu0 0.0
    %108 = vmatprep.subr.mxu0 0.0
    %109 = vmatpush1.msra.mxu0 0.0
    %110 = vmatprep.subr.mxu0 0.0
    %111 = vmatpush1.msra.mxu0 0.0
    %112 = vmatprep.subr.mxu0 0.0
    %113 = vmatpush1.msra.mxu0 0.0
    %114 = vmatprep.subr.mxu0 0.0
    %115 = vmatpush1.msra.mxu0 0.0
    %116 = vmatprep.subr.mxu0 0.0
    %117 = vmatpush1.msra.mxu0 0.0
    %118 = vmatprep.subr.mxu0 0.0
    %119 = vmatpush1.msra.mxu0 0.0
    %120 = vmatprep.subr.mxu0 0.0
    %121 = vmatpush1.msra.mxu0 0.0
    %122 = vmatprep.subr.mxu0 0.0
    %123 = vmatpush1.msra.mxu0 0.0
    %124 = vmatprep.subr.mxu0 0.0
    %125 = vmatpush1.msra.mxu0 0.0
    %126 = vmatprep.subr.mxu0 0.0
    %127 = vmatpush1.msra.mxu0 0.0
    %128 = vmatprep.mubr.f32.mxu0 0.0
    %129 = vmatmul.mubr.f32.gmra.mrb[0].mxu0 %v47
    %v130 = vpop.f32.mrb[0].mxu0
    %v131 = vadd.f32 0.0, %v130
    %v132 = vpop.f32.mrb[0].mxu0
    %133 = vmatprep.mubr.f32.mxu0 0.0
    %134 = vmatmul.mubr.f32.gmra.mrb[0].mxu0 %v50
    %v135 = vpop.f32.mrb[0].mxu0
    %v136 = vadd.f32 0.0, %v135
    %v137 = vpop.f32.mrb[0].mxu0
    %138 = vmatprep.mubr.f32.mxu0 0.0
    %139 = vmatmul.mubr.f32.gmra.mrb[0].mxu0 %v53
    %v140 = vpop.f32.mrb[0].mxu0
    %v141 = vadd.f32 0.0, %v140
    %v142 = vpop.f32.mrb[0].mxu0
    %143 = vmatprep.mubr.f32.mxu0 0.0
    %144 = vmatmul.mubr.f32.gmra.mrb[0].mxu0 %v56
    %v145 = vpop.f32.mrb[0].mxu0
    %v146 = vadd.f32 0.0, %v145
    %v147 = vpop.f32.mrb[0].mxu0
    %148 = vmatprep.mubr.f32.mxu0 0.0
    %149 = vmatmul.mubr.f32.gmra.mrb[0].mxu0 %v59
    %v150 = vpop.f32.mrb[0].mxu0
    %v151 = vadd.f32 0.0, %v150
    %v152 = vpop.f32.mrb[0].mxu0
    %153 = vmatprep.mubr.f32.mxu0 0.0
    %154 = vmatmul.mubr.f32.gmra.mrb[0].mxu0 %v62
    %v155 = vpop.f32.mrb[0].mxu0
    %v156 = vadd.f32 0.0, %v155
    %v157 = vpop.f32.mrb[0].mxu0
    %158 = vdwg.mxu0
    %v159 = vadd.s32 %v19, 32
    %v160 = vadd.s32 %v19, 40
    %v161 = vlaneseq
    %v162 = vshrl.u32 %v161, 7
    %v163 = vsub.s32 0, %v162
    %v164 = vrot.slane %v16, %v163
    %vm165 = vcmp.eq.s32.totalorder %v19, %v164
    %vm166 = vcmp.eq.s32.totalorder %v20, %v164
    %vm167 = vcmp.eq.s32.totalorder %v21, %v164
    %vm168 = vcmp.eq.s32.totalorder %v22, %v164
    %vm169 = vcmp.eq.s32.totalorder %v159, %v164
    %vm170 = vcmp.eq.s32.totalorder %v160, %v164
    %v171 = vsel %vm165, 1, 0
    %v172 = vsel %vm166, 1, 0
    %v173 = vsel %vm167, 1, 0
    %v174 = vsel %vm168, 1, 0
    %v175 = vsel %vm169, 1, 0
    %v176 = vsel %vm170, 1, 0
    %v177 = vcvt.s32.f32 %v171
    %v178 = vcvt.s32.f32 %v172
    %v179 = vcvt.s32.f32 %v173
    %v180 = vcvt.s32.f32 %v174
    %v181 = vcvt.s32.f32 %v175
    %v182 = vcvt.s32.f32 %v176
    %v183 = vlaneseq
    %v184 = vshrl.u32 %v183, 7
    %v185 = vsub.s32 0, %v184
    %v186 = vrot.slane %v17, %v185
    %vm187 = vcmp.eq.s32.totalorder %v19, %v186
    %vm188 = vcmp.eq.s32.totalorder %v20, %v186
    %vm189 = vcmp.eq.s32.totalorder %v21, %v186
    %vm190 = vcmp.eq.s32.totalorder %v22, %v186
    %vm191 = vcmp.eq.s32.totalorder %v159, %v186
    %vm192 = vcmp.eq.s32.totalorder %v160, %v186
    %v193 = vsel %vm187, 1, 0
    %v194 = vsel %vm188, 1, 0
    %v195 = vsel %vm189, 1, 0
    %v196 = vsel %vm190, 1, 0
    %v197 = vsel %vm191, 1, 0
    %v198 = vsel %vm192, 1, 0
    %v199 = vcvt.s32.f32 %v193
    %v200 = vcvt.s32.f32 %v194
    %v201 = vcvt.s32.f32 %v195
    %v202 = vcvt.s32.f32 %v196
    %v203 = vcvt.s32.f32 %v197
    %v204 = vcvt.s32.f32 %v198
    %v205 = vmul.f32 %v131, %v177
    %v206 = vmul.f32 %v136, %v178
    %v207 = vmul.f32 %v141, %v179
    %v208 = vmul.f32 %v146, %v180
    %v209 = vmul.f32 %v151, %v181
    %v210 = vmul.f32 %v156, %v182
    %vm211 = vcmask 130048
    %v212 = vsel %vm211, %v205, 0.0
    %v213 = vsel %vm211, %v206, 0.0
    %v214 = vadd.f32 %v212, %v213
    %v215 = vsel %vm211, %v207, 0.0
    %v216 = vadd.f32 %v214, %v215
    %v217 = vsel %vm211, %v208, 0.0
    %v218 = vadd.f32 %v216, %v217
    %v219 = vsel %vm211, %v209, 0.0
    %v220 = vadd.f32 %v218, %v219
    %v221 = vsel %vm211, %v210, 0.0
    %v222 = vadd.f32 %v220, %v221
    %v223 = vrot.slane %v222, 4
    %v224 = vadd.f32 %v222, %v223
    %v225 = vrot.slane %v224, 2
    %v226 = vadd.f32 %v224, %v225
    %v227 = vrot.slane %v226, 1
    %v228 = vadd.f32 %v226, %v227
    %v229 = vmul.f32 %v131, %v199
    %v230 = vmul.f32 %v136, %v200
    %v231 = vmul.f32 %v141, %v201
    %v232 = vmul.f32 %v146, %v202
    %v233 = vmul.f32 %v151, %v203
    %v234 = vmul.f32 %v156, %v204
    %v235 = vsel %vm211, %v229, 0.0
    %v236 = vsel %vm211, %v230, 0.0
    %v237 = vadd.f32 %v235, %v236
    %v238 = vsel %vm211, %v231, 0.0
    %v239 = vadd.f32 %v237, %v238
    %v240 = vsel %vm211, %v232, 0.0
    %v241 = vadd.f32 %v239, %v240
    %v242 = vsel %vm211, %v233, 0.0
    %v243 = vadd.f32 %v241, %v242
    %v244 = vsel %vm211, %v234, 0.0
    %v245 = vadd.f32 %v243, %v244
    %v246 = vrot.slane %v245, 4
    %v247 = vadd.f32 %v245, %v246
    %v248 = vrot.slane %v247, 2
    %v249 = vadd.f32 %v247, %v248
    %v250 = vrot.slane %v249, 1
    %v251 = vadd.f32 %v249, %v250
    %v252 = vsub.f32 %v228, %v251
    %v253 = vmin.f32 %v252, 0.0
    %v254 = vand.u32 2147483647, %v252
    %v255 = vsub.f32 0.0, %v254
    %v256 = vmul.f32 %v255, 1.442695
    %v257 = vpow.pop %v256
    %v258 = vadd.f32 %v257, 1.0
    %v259 = vlog2.pop %v258
    %v260 = vmul.f32 %v259, 0.6931472
    %v261 = vmul.f32 -0.5, %v257
    %v262 = vadd.f32 %v261, 1.0
    %v263 = vmul.f32 %v262, %v257
    %v264 = vand.u32 2147483647, %v257
    %vm265 = vcmp.lt.f32.partialorder %v264, 0.0004427343
    %v266 = vsel %vm265, %v263, %v260
    %v267 = vsub.f32 %v253, %v266
    %v268 = vld [vmem:[%s2] sm:$0x3]
    %v269 = vsub.f32 %v228, %v268
    %v270 = vand.u32 2147483647, %v269
    %vm271 = vcmp.lt.f32.partialorder %v270, 1.0
    %v272 = vmul.f32 %v269, 0.5
    %v273 = vmul.f32 %v272, %v269
    %v274 = vsub.f32 %v270, 0.5
    %v275 = vsel %vm271, %v273, %v274
    %v276 = vsub.f32 %v251, %v268
    %v277 = vand.u32 2147483647, %v276
    %vm278 = vcmp.lt.f32.partialorder %v277, 1.0
    %v279 = vmul.f32 %v276, 0.5
    %v280 = vmul.f32 %v279, %v276
    %v281 = vsub.f32 %v277, 0.5
    %v282 = vsel %vm278, %v280, %v281
    %v283 = vmul.f32 %v267, -0.04375
    %v285 = vrot.slane %v282, 1
    %v287 = vadd.f32 %v275, %v285
    %v288 = vmul.f32 %v287, 0.009375
    %v289 = vadd.f32 %v283, %v288
    %vm290 = vcmask 122880
    %291 = vst.msk [vmem:[#allocation2] sm:$0x1] %vm290, %v289
    // Predicated region
    $region14: #{tpu_custom_call.1} parent=1 // pred_check
      _
    $region15: #{tpu_custom_call.1} parent=1 // pred_check_branch
      %293 = sbr.rel (0) target = $region17
    $region16: #{tpu_custom_call.1} parent=1 // pred_region
      %s295 = ssub.s32 16, 16
      %296 = vsyncadd [#allocation3], %s295
      %s298 = sshll.u32 [#allocation2], 4
      %s299 = int_to_ptr.vmem [resolvable:$true] %s298
      %301 = dma.vmem_to_hbm [thread:$0]  %s299, 16, %s3, [#allocation3]
    $region17: #{tpu_custom_call.1} parent=1 // pred_fallthru
      _
    // Predicated region
    $region18: #{tpu_custom_call.1} parent=1 // pred_check
      _
    $region19: #{tpu_custom_call.1} parent=1 // pred_check_branch
      %303 = sbr.rel (0) target = $region21
    $region20: #{tpu_custom_call.1} parent=1 // pred_region
      %304 = dma.done [#allocation3], 16
    $region21: #{tpu_custom_call.1} parent=1 // pred_fallthru
      _
    %305 = vsyncpa [#allocation3], 1

</llo_original>
